<compile_context>
chip_gen: v7x
topology: tpu7x:2x2x1
jax: 0.10.0
libtpu: 0.0.40
codegen_flags: <defaults>
</compile_context>

<pallas_src>
import math
import functools
import numpy as np
import jax
import jax.numpy as jnp
from jax import lax
from jax.experimental import pallas as pl
from jax.experimental.pallas import tpu as pltpu


# ------------------------------ small helpers -------------------------------

def _round_up(v, m):
    return (v + m - 1) // m * m


def _pick_tile(dim, unit, max_tile, min_blocks=1):
    """(tile, padded_dim): tile multiple of `unit`, dividing padded_dim,
    <= max_tile; optionally capped so the axis gets >= min_blocks blocks
    (keeps both TensorCores busy on v7x)."""
    p = _round_up(dim, unit)
    cap = max_tile
    if min_blocks > 1 and p >= min_blocks * unit:
        cap = min(cap, p // min_blocks)
    cap = max(unit, cap - cap % unit)
    if p <= cap:
        return p, p
    t = cap
    while t >= unit:
        if p % t == 0:
            return t, p
        t -= unit
    return unit, p


def _pick_divisor_tile(period, unit, max_tile):
    """Largest multiple of `unit` dividing `period`, <= max_tile (or None)."""
    t = min(max_tile, period)
    t -= t % unit
    while t >= unit:
        if period % t == 0:
            return t
        t -= unit
    return None


def _pad_to(a, shape):
    pads = [(0, s - d) for d, s in zip(a.shape, shape)]
    return jnp.pad(a, pads)


# --------------------------- tiled fused matmul ------------------------------

def _mm_kernel_1k(x_ref, w_ref, b_ref, *rest, act, n_add):
    """Single K step: no scratch accumulator, write output directly."""
    adds = rest[:n_add]
    o_ref = rest[n_add]
    r = jnp.dot(x_ref[...], w_ref[...], preferred_element_type=jnp.float32)
    r = r + b_ref[...]
    for a in adds:
        r = r + a[...].astype(jnp.float32)
    if act == "relu":
        r = jnp.maximum(r, 0.0)
    o_ref[...] = r.astype(o_ref.dtype)


def _mm_kernel_mk(x_ref, w_ref, b_ref, *rest, act, n_add):
    """Multiple K steps: f32 VMEM accumulator, init/finalize via pl.when."""
    adds = rest[:n_add]
    o_ref = rest[n_add]
    acc_ref = rest[n_add + 1]
    k = pl.program_id(2)

    @pl.when(k == 0)
    def _():
        acc_ref[...] = jnp.zeros_like(acc_ref)

    acc_ref[...] += jnp.dot(x_ref[...], w_ref[...],
                            preferred_element_type=jnp.float32)

    @pl.when(k == pl.num_programs(2) - 1)
    def _():
        r = acc_ref[...] + b_ref[...]
        for a in adds:
            r = r + a[...].astype(jnp.float32)
        if act == "relu":
            r = jnp.maximum(r, 0.0)
        o_ref[...] = r.astype(o_ref.dtype)


def pallas_matmul(x, w, b, *, residual=None, periodic_add=None, act=None,
                  out_dtype=jnp.bfloat16):
    """o = act(x @ w + b [+ residual] [+ periodic_add]).

    x:(M,K), w:(K,N), b:(N,).  `residual` has M rows; `periodic_add` is
    (array, period): an f32 (period, N) array added with row period `period`
    (used to fuse the 2D positional encoding into the 1x1-projection
    epilogue without materializing a B x copy or an extra HBM pass)."""
    M, K = x.shape
    K2, N = w.shape
    assert K == K2

    tn, Np = _pick_tile(N, 128, 512)

    # K tiling: fewest 128-aligned steps of width <= 1024 (single step drops
    # the scratch accumulator entirely).
    kcap = 1024
    n_k = -(-K // kcap)
    tk = _round_up(-(-K // n_k), 128)
    Kp = tk * n_k
    multi_k = n_k > 1

    if periodic_add is not None:
        assert act is None
        pe, period = periodic_add
        tm = _pick_divisor_tile(period, 16, 512)
        if tm is None:  # cannot align tiles to the period -> add outside
            out = pallas_matmul(x, w, b, residual=residual, act=None,
                                out_dtype=jnp.float32)
            out = out + jnp.tile(pe, (M // period, 1))
            return out.astype(out_dtype)
        Mp = _round_up(M, tm)
    else:
        tm, Mp = _pick_tile(M, 16, 512, min_blocks=2)

    xb = _pad_to(x.astype(jnp.bfloat16), (Mp, Kp))
    wb = _pad_to(w.astype(jnp.bfloat16), (Kp, Np))
    bb = _pad_to(b.astype(jnp.float32).reshape(1, N), (1, Np))

    def im(f2, f3):
        return f3 if multi_k else f2

    in_specs = [
        pl.BlockSpec((tm, tk), im(lambda i, j: (i, 0),
                                  lambda i, j, k: (i, k))),
        pl.BlockSpec((tk, tn), im(lambda i, j: (0, j),
                                  lambda i, j, k: (k, j))),
        pl.BlockSpec((1, tn), im(lambda i, j: (0, j),
                                 lambda i, j, k: (0, j))),
    ]
    args = [xb, wb, bb]
    n_add = 0
    if residual is not None:
        args.append(_pad_to(residual.astype(jnp.bfloat16), (Mp, Np)))
        in_specs.append(pl.BlockSpec(
            (tm, tn), im(lambda i, j: (i, j), lambda i, j, k: (i, j))))
        n_add += 1
    if periodic_add is not None:
        pe, period = periodic_add
        pe_blocks = period // tm
        args.append(_pad_to(pe.astype(jnp.float32), (period, Np)))
        in_specs.append(pl.BlockSpec(
            (tm, tn), im(lambda i, j: (i % pe_blocks, j),
                         lambda i, j, k: (i % pe_blocks, j))))
        n_add += 1

    if multi_k:
        kernel = functools.partial(_mm_kernel_mk, act=act, n_add=n_add)
        grid = (Mp // tm, Np // tn, n_k)
        out_spec = pl.BlockSpec((tm, tn), lambda i, j, k: (i, j))
        scratch = [pltpu.VMEM((tm, tn), jnp.float32)]
        dims = ("parallel", "parallel", "arbitrary")
    else:
        kernel = functools.partial(_mm_kernel_1k, act=act, n_add=n_add)
        grid = (Mp // tm, Np // tn)
        out_spec = pl.BlockSpec((tm, tn), lambda i, j: (i, j))
        scratch = []
        dims = ("parallel", "parallel")

    out = pl.pallas_call(
        kernel,
        out_shape=jax.ShapeDtypeStruct((Mp, Np), out_dtype),
        grid=grid,
        in_specs=in_specs,
        out_specs=out_spec,
        scratch_shapes=scratch,
        compiler_params=pltpu.CompilerParams(
            dimension_semantics=dims,
            vmem_limit_bytes=64 * 1024 * 1024),
    )(*args)
    return out[:M, :N]


# ----------------------------- maxpool kernel --------------------------------

def _maxpool_kernel(w_ref, o_ref):
    # All 9 windows of this row tile are in VMEM: one reduction, one store.
    o_ref[...] = jnp.max(w_ref[...], axis=0)


def pallas_maxpool_windows(wins):
    """wins: (9, M, C) shifted pooling windows -> (M, C) elementwise max."""
    KW, M, C = wins.shape
    tm, Mp = _pick_tile(M, 16, 512, min_blocks=2)
    wp = _pad_to(wins, (KW, Mp, C))
    out = pl.pallas_call(
        _maxpool_kernel,
        out_shape=jax.ShapeDtypeStruct((Mp, C), wins.dtype),
        grid=(Mp // tm,),
        in_specs=[pl.BlockSpec((KW, tm, C), lambda m: (0, m, 0))],
        out_specs=pl.BlockSpec((tm, C), lambda m: (m, 0)),
        compiler_params=pltpu.CompilerParams(
            dimension_semantics=("parallel",)),
    )(wp)
    return out[:M]


# --------------------- fused bidirectional LSTM kernel -----------------------

def _bilstm_kernel(xp_ref, whh_f_ref, whh_b_ref, o_ref, hf, cf, hb, cb):
    T = xp_ref.shape[0]
    hid = cf.shape[-1]
    g4 = 4 * hid

    hf[...] = jnp.zeros_like(hf)
    cf[...] = jnp.zeros_like(cf)
    hb[...] = jnp.zeros_like(hb)
    cb[...] = jnp.zeros_like(cb)

    dense_gates = (hid % 128 == 0)

    def gates_to_hc(gates, c_prev):
        # PyTorch gate order: i, f, g, o
        if dense_gates:
            i = jax.nn.sigmoid(gates[:, 0 * hid:1 * hid])
            f = jax.nn.sigmoid(gates[:, 1 * hid:2 * hid])
            g = jnp.tanh(gates[:, 2 * hid:3 * hid])
            o = jax.nn.sigmoid(gates[:, 3 * hid:4 * hid])
        else:
            # hid < 128: run the EUP activations lane-dense over the full
            # 4*hid width, then slice (avoids 4x quarter-full vreg pushes).
            s_all = jax.nn.sigmoid(gates)
            t_all = jnp.tanh(gates)
            i = s_all[:, 0 * hid:1 * hid]
            f = s_all[:, 1 * hid:2 * hid]
            g = t_all[:, 2 * hid:3 * hid]
            o = s_all[:, 3 * hid:4 * hid]
        c = f * c_prev + i * g
        h = o * jnp.tanh(c)
        return h, c

    def step(s, carry):
        # forward direction, time s
        xt = xp_ref[s]                                        # (tm, 8h) bf16
        gf = xt[:, :g4].astype(jnp.float32) + jnp.dot(
            hf[...], whh_f_ref[...], preferred_element_type=jnp.float32)
        h_f, c_f = gates_to_hc(gf, cf[...])
        hf[...] = h_f.astype(hf.dtype)
        cf[...] = c_f
        o_ref[s, :, 0:hid] = h_f

        # backward direction, time T-1-s
        tb = T - 1 - s
        xtb = xp_ref[tb]
        gb = xtb[:, g4:].astype(jnp.float32) + jnp.dot(
            hb[...], whh_b_ref[...], preferred_element_type=jnp.float32)
        h_b, c_b = gates_to_hc(gb, cb[...])
        hb[...] = h_b.astype(hb.dtype)
        cb[...] = c_b
        o_ref[tb, :, hid:2 * hid] = h_b
        return carry

    lax.fori_loop(0, T, step, 0, unroll=2)


def pallas_bilstm(xp, w_hh_f_t, w_hh_b_t, hid):
    """xp: (T, M, 8*hid) bf16 time-major gate pre-activations
    ([fwd i,f,g,o | bwd i,f,g,o], both input biases already folded in);
    w_hh_*_t: (hid, 4*hid) bf16.  Returns (T, M, 2*hid) f32 with
    out[..., :hid] = forward, out[..., hid:] = backward, each stored at its
    natural (un-reversed) time index (matches PyTorch bidirectional LSTM)."""
    T, M, G = xp.shape
    tm, Mp = _pick_tile(M, 8, 256, min_blocks=2)
    xpp = _pad_to(xp, (T, Mp, G))
    out = pl.pallas_call(
        _bilstm_kernel,
        out_shape=jax.ShapeDtypeStruct((T, Mp, 2 * hid), jnp.float32),
        grid=(Mp // tm,),
        in_specs=[
            pl.BlockSpec((T, tm, G), lambda m: (0, m, 0)),
            pl.BlockSpec((hid, 4 * hid), lambda m: (0, 0)),
            pl.BlockSpec((hid, 4 * hid), lambda m: (0, 0)),
        ],
        out_specs=pl.BlockSpec((T, tm, 2 * hid), lambda m: (0, m, 0)),
        scratch_shapes=[pltpu.VMEM((tm, hid), jnp.bfloat16),   # h fwd (bf16)
                        pltpu.VMEM((tm, hid), jnp.float32),    # c fwd (f32)
                        pltpu.VMEM((tm, hid), jnp.bfloat16),   # h bwd
                        pltpu.VMEM((tm, hid), jnp.float32)],   # c bwd
        compiler_params=pltpu.CompilerParams(
            dimension_semantics=("parallel",),
            vmem_limit_bytes=32 * 1024 * 1024),
    )(xpp, w_hh_f_t, w_hh_b_t)
    return out[:, :M]


# --------------------------------- JAX glue ----------------------------------

def im2col(x, kh, kw, stride, pad):
    """x: (N,H,W,C) bf16 -> patches (N*Ho*Wo, kh*kw*C) in (kh,kw,C) order."""
    # TODO(synk): replace im2col with a direct-conv Pallas kernel (taps folded
    # into the reduction grid axis / manual halo DMA) to avoid the kh*kw x HBM
    # expansion of the patch matrix; kept as im2col here for robustness.
    if pad > 0:
        x = jnp.pad(x, ((0, 0), (pad, pad), (pad, pad), (0, 0)))
    N, Hp, Wp, C = x.shape
    Ho = (Hp - kh) // stride + 1
    Wo = (Wp - kw) // stride + 1
    cols = []
    for i in range(kh):
        for j in range(kw):
            cols.append(x[:, i:i + stride * (Ho - 1) + 1:stride,
                          j:j + stride * (Wo - 1) + 1:stride, :])
    patches = jnp.concatenate(cols, axis=-1)
    return patches.reshape(N * Ho * Wo, kh * kw * C), Ho, Wo


def conv_bn(x, w_oihw, bn, stride, pad, act=None, residual=None):
    """Conv2d(bias=False) + BatchNorm (eval, folded) [+ residual] [+ ReLU]."""
    gamma, beta, mean, var = bn
    s = gamma / jnp.sqrt(var + 1e-5)
    cout, cin, kh, kw = w_oihw.shape
    w2 = (jnp.transpose(w_oihw, (2, 3, 1, 0)).reshape(kh * kw * cin, cout)
          * s[None, :])
    b2 = beta - mean * s
    patches, Ho, Wo = im2col(x, kh, kw, stride, pad)
    res2 = residual.reshape(-1, cout) if residual is not None else None
    out = pallas_matmul(patches, w2, b2, residual=res2, act=act)
    return out.reshape(x.shape[0], Ho, Wo, cout)


def maxpool_3x3_s2_p1(x):
    # NOTE: -inf padding is safe here; inputs come from a ReLU (>= 0) and every
    # pooling window contains at least one real (non-pad) element.
    N, H, W, C = x.shape
    xp = jnp.pad(x, ((0, 0), (1, 1), (1, 1), (0, 0)),
                 constant_values=-jnp.inf)
    Ho = (H + 2 - 3) // 2 + 1
    Wo = (W + 2 - 3) // 2 + 1
    wins = []
    for i in range(3):
        for j in range(3):
            wins.append(xp[:, i:i + 2 * (Ho - 1) + 1:2,
                           j:j + 2 * (Wo - 1) + 1:2, :].reshape(N * Ho * Wo, C))
    # TODO(synk): the 9-window stack is still materialized in HBM; a direct
    # pooling kernel reading the padded input with halos would remove it.
    wins = jnp.stack(wins, axis=0)                       # (9, M, C)
    M = N * Ho * Wo
    # Fold rows into lanes so blocks/stores are lane-dense (C=64 -> 128 lanes).
    fold = 128 // C if (C < 128 and 128 % C == 0) else 1
    if fold > 1:
        Mf = _round_up(M, fold)
        wins = _pad_to(wins, (9, Mf, C)).reshape(9, Mf // fold, fold * C)
    out = pallas_maxpool_windows(wins)
    if fold > 1:
        out = out.reshape(-1, C)[:M]
    return out.reshape(N, Ho, Wo, C)


def basic_block(x, p, stride=1):
    identity = x
    out = conv_bn(x, p["conv1_w"], p["bn1"], stride, 1, act="relu")
    if "down_w" in p:
        identity = conv_bn(x, p["down_w"], p["down_bn"], stride, 0, act=None)
    out = conv_bn(out, p["conv2_w"], p["bn2"], 1, 1, act="relu",
                  residual=identity)
    return out


def positional_encoding_2d(d_model, height, width):
    assert d_model % 4 == 0
    pe = np.zeros((d_model, height, width), dtype=np.float32)
    half = d_model // 2
    div_term = np.exp(np.arange(0.0, half, 2) * -(math.log(10000.0) / half))
    pos_w = np.arange(0.0, width)[:, None]
    pos_h = np.arange(0.0, height)[:, None]
    pe[0:half:2, :, :] = np.repeat(np.sin(pos_w * div_term).T[:, None, :],
                                   height, axis=1)
    pe[1:half:2, :, :] = np.repeat(np.cos(pos_w * div_term).T[:, None, :],
                                   height, axis=1)
    pe[half::2, :, :] = np.repeat(np.sin(pos_h * div_term).T[:, :, None],
                                  width, axis=2)
    pe[half + 1::2, :, :] = np.repeat(np.cos(pos_h * div_term).T[:, :, None],
                                      width, axis=2)
    return jnp.asarray(pe)  # (C, H, W)


def encoder_forward(x_nchw, params, d_model):
    # NCHW -> NHWC, bf16 inter-layer activations (f32 accumulation in-kernel).
    x = jnp.transpose(x_nchw, (0, 2, 3, 1)).astype(jnp.bfloat16)

    # ---- backbone = resnet34 children[:6] ----
    x = conv_bn(x, params["conv1_w"], params["bn1"], stride=2, pad=3,
                act="relu")
    x = maxpool_3x3_s2_p1(x)
    for p in params["layer1"]:
        x = basic_block(x, p, stride=1)
    for i, p in enumerate(params["layer2"]):
        x = basic_block(x, p, stride=2 if i == 0 else 1)

    B, H, W, cin = x.shape  # cin = 128

    # ---- 1x1 projection (bias) with the 2D positional encoding fused into
    #      the matmul epilogue (PE has row period H*W over the B*H*W rows) ----
    w_proj = params["proj_w"].reshape(d_model, cin).T            # (cin, C)
    pe = positional_encoding_2d(d_model, H, W)                   # (C, H, W)
    pe_flat = jnp.transpose(pe, (1, 2, 0)).reshape(H * W, d_model)
    feat = pallas_matmul(x.reshape(B * H * W, cin), w_proj, params["proj_b"],
                         periodic_add=(pe_flat, H * W),
                         out_dtype=jnp.bfloat16)

    # ---- row-wise bidirectional LSTM over width; rows = B*H, time = W ----
    hid = d_model // 2
    M = B * H
    T = W

    # Re-order to time-major once on the narrow (d_model-wide) feature map so
    # the 4x-wider gate pre-activations need no HBM transpose afterwards.
    feat_tm = jnp.transpose(feat.reshape(M, T, d_model),
                            (1, 0, 2)).reshape(T * M, d_model)

    # one matmul for both directions' input projections (lane-dense 8*hid out)
    w_ih_all = jnp.concatenate(
        [params["lstm_w_ih"].T, params["lstm_w_ih_rev"].T], axis=1)   # (d, 8h)
    b_all = jnp.concatenate(
        [params["lstm_b_ih"] + params["lstm_b_hh"],
         params["lstm_b_ih_rev"] + params["lstm_b_hh_rev"]], axis=0)  # (8h,)
    xp = pallas_matmul(feat_tm, w_ih_all, b_all, out_dtype=jnp.bfloat16)
    xp = xp.reshape(T, M, 8 * hid)                                    # (T,M,8h)

    out = pallas_bilstm(xp,
                        params["lstm_w_hh"].T.astype(jnp.bfloat16),
                        params["lstm_w_hh_rev"].T.astype(jnp.bfloat16),
                        hid)                                          # (T,M,2h)
    out = jnp.transpose(out, (1, 0, 2))                               # (M,T,2h)
    return out.reshape(B, H, W, d_model)


# ------------------------ deterministic parameter init -----------------------

def make_params(key, d_model):
    keys = iter(jax.random.split(key, 256))

    def conv_w(cout, cin, kh, kw):
        fan_in = cin * kh * kw
        return (jax.random.normal(next(keys), (cout, cin, kh, kw), jnp.float32)
                * np.sqrt(2.0 / fan_in))

    def bn(c):
        gamma = 1.0 + 0.1 * jax.random.normal(next(keys), (c,), jnp.float32)
        beta = 0.1 * jax.random.normal(next(keys), (c,), jnp.float32)
        mean = 0.1 * jax.random.normal(next(keys), (c,), jnp.float32)
        var = jnp.ones((c,), jnp.float32)
        return (gamma, beta, mean, var)

    # TODO(synk): pretrained resnet34 weights are not loadable in-script;
    # deterministic synthetic weights are used instead.
    params = {"conv1_w": conv_w(64, 3, 7, 7), "bn1": bn(64)}

    def block(cin, cout, downsample):
        p = {"conv1_w": conv_w(cout, cin, 3, 3), "bn1": bn(cout),
             "conv2_w": conv_w(cout, cout, 3, 3), "bn2": bn(cout)}
        if downsample:
            p["down_w"] = conv_w(cout, cin, 1, 1)
            p["down_bn"] = bn(cout)
        return p

    params["layer1"] = [block(64, 64, False) for _ in range(3)]
    params["layer2"] = [block(64, 128, True)] + [block(128, 128, False)
                                                 for _ in range(3)]

    params["proj_w"] = conv_w(d_model, 128, 1, 1)
    params["proj_b"] = 0.01 * jax.random.normal(next(keys), (d_model,),
                                                jnp.float32)

    hid = d_model // 2
    bound = 1.0 / np.sqrt(hid)

    def uni(shape):
        return jax.random.uniform(next(keys), shape, jnp.float32, -bound, bound)

    for sfx in ("", "_rev"):
        params[f"lstm_w_ih{sfx}"] = uni((4 * hid, d_model))
        params[f"lstm_w_hh{sfx}"] = uni((4 * hid, hid))
        params[f"lstm_b_ih{sfx}"] = uni((4 * hid,))
        params[f"lstm_b_hh{sfx}"] = uni((4 * hid,))
    return params


if __name__ == "__main__":
    d_model = 64  # small, divisible by 4 (module default is 256)
    key = jax.random.PRNGKey(0)
    kp, kx = jax.random.split(key)
    params = make_params(kp, d_model)
    x = jax.random.normal(kx, (2, 3, 32, 32), jnp.float32)  # NCHW like PyTorch
    out = jax.block_until_ready(encoder_forward(x, params, d_model))
    assert out.shape == (2, 4, 4, d_model), out.shape
    assert bool(jnp.all(jnp.isfinite(out)))
    print("KERNEL_OK")
</pallas_src>

<mosaic_0001>
module attributes {stable_mosaic.version = 11 : i64} {
  func.func @_mm_kernel_1k(%arg0: i32, %arg1: i32, %arg2: memref<256x256xbf16, #tpu.memory_space<vmem>>, %arg3: memref<256x128xbf16, #tpu.memory_space<vmem>>, %arg4: memref<1x128xf32, #tpu.memory_space<vmem>>, %arg5: memref<256x128xbf16, #tpu.memory_space<vmem>>) attributes {dimension_semantics = [#tpu.dimension_semantics<parallel>, #tpu.dimension_semantics<parallel>], iteration_bounds = array<i64: 2, 1>, scalar_prefetch = 0 : i64, scratch_operands = 0 : i64, tpu.core_type = #tpu.core_type<tc>, window_params = [{transform_indices = @transform_0, window_bounds = array<i64: 256, 256>}, {transform_indices = @transform_1, window_bounds = array<i64: 256, 128>}, {transform_indices = @transform_2, window_bounds = array<i64: 1, 128>}, {transform_indices = @transform_3, window_bounds = array<i64: 256, 128>}]} {
    %c0 = arith.constant 0 : index
    %c0_0 = arith.constant 0 : index
    %0 = vector.load %arg2[%c0, %c0_0] : memref<256x256xbf16, #tpu.memory_space<vmem>>, vector<256x256xbf16>
    %c0_1 = arith.constant 0 : index
    %c0_2 = arith.constant 0 : index
    %1 = vector.load %arg3[%c0_1, %c0_2] : memref<256x128xbf16, #tpu.memory_space<vmem>>, vector<256x128xbf16>
    %cst = arith.constant dense<0.000000e+00> : vector<256x128xf32>
    %2 = tpu.matmul %0, %1, %cst {dimension_numbers = #tpu.dot_dimension_numbers<[1], [0], [0], [1], [0, 0, 1, 1], [], []>} : vector<256x256xbf16>, vector<256x128xbf16>, vector<256x128xf32> -> vector<256x128xf32>
    %c0_3 = arith.constant 0 : index
    %c0_4 = arith.constant 0 : index
    %3 = vector.load %arg4[%c0_3, %c0_4] : memref<1x128xf32, #tpu.memory_space<vmem>>, vector<1x128xf32>
    %4 = vector.broadcast %3 : vector<1x128xf32> to vector<256x128xf32>
    %5 = arith.addf %2, %4 : vector<256x128xf32>
    %cst_5 = arith.constant 0.000000e+00 : f32
    %6 = vector.broadcast %cst_5 : f32 to vector<256x128xf32>
    %7 = arith.maximumf %5, %6 : vector<256x128xf32>
    %8 = arith.truncf %7 : vector<256x128xf32> to vector<256x128xbf16>
    %c0_6 = arith.constant 0 : index
    %c0_7 = arith.constant 0 : index
    %9 = vector.load %arg5[%c0_6, %c0_7] : memref<256x128xbf16, #tpu.memory_space<vmem>>, vector<256x128xbf16>
    tpu.vector_store %arg5[%c0_6, %c0_7], %8 {strides = array<i32>} : memref<256x128xbf16, #tpu.memory_space<vmem>>, vector<256x128xbf16>,
    return
  }
  func.func @transform_0(%arg0: i32, %arg1: i32) -> (i32, i32) {
    %c0_i32 = arith.constant 0 : i32
    %c0_i32_0 = arith.constant 0 : i32
    return %arg0, %c0_i32 : i32, i32
  }
  func.func @transform_1(%arg0: i32, %arg1: i32) -> (i32, i32) {
    %c0_i32 = arith.constant 0 : i32
    %c0_i32_0 = arith.constant 0 : i32
    return %c0_i32, %arg1 : i32, i32
  }
  func.func @transform_2(%arg0: i32, %arg1: i32) -> (i32, i32) {
    %c0_i32 = arith.constant 0 : i32
    %c0_i32_0 = arith.constant 0 : i32
    return %c0_i32, %arg1 : i32, i32
  }
  func.func @transform_3(%arg0: i32, %arg1: i32) -> (i32, i32) {
    %c0_i32 = arith.constant 0 : i32
    return %arg0, %arg1 : i32, i32
  }
}

</mosaic_0001>

<llo_original>
// kernel: tpu_custom_call.1
$region0: #{tpu_custom_call.1}
  #allocation0 [shape = 'u32[]', space=smem, size = 0x4, offset = 0x4, fixed_abs, tag = 'smem constant byte address 0x4 - core index']
  #allocation1 [shape = 'u32[144,128]{1,0:T(1,128)}', space=vmem, size = 0x12000, scoped, tag = 'internal scratch']
  %s0 = inlined_call_operand.hbm [shape: bf16[512,256], index: 0, kind: input, shape index: {}]
  %s1 = inlined_call_operand.hbm [shape: bf16[256,128], index: 1, kind: input, shape index: {}]
  %s2 = inlined_call_operand.hbm [shape: f32[1,128], index: 2, kind: input, shape index: {}]
  %s3 = inlined_call_operand.hbm [shape: bf16[512,128], index: 3, kind: output, shape index: {}]
  %s4 = sld [smem:[#allocation0]]
  $region57: #{tpu_custom_call.1} parent=0
    _
  %s6 = ssub.s32 1, %s4
  %s7 = scalar_select 0, %s6, %s4
  $region1: #{tpu_custom_call.1} parent=0
    #allocation2 [shape = 'u8[262144]{0}', space=vmem, size = 0x40000, scoped, tag = 'input window, operand 0']
    #allocation3 [shape = 's32[2]{0}', space=sflag, size = 0x8, scoped, tag = 'scoped memory for tpu_custom_call.1']
    #allocation4 [shape = 's32[2]{0}', space=sflag, size = 0x8, scoped, tag = 'scoped memory for tpu_custom_call.1']
    #allocation5 [shape = 'u8[65536]{0}', space=vmem, size = 0x10000, scoped, tag = 'input window, operand 1, single buffered']
    #allocation6 [shape = 's32[1]{0}', space=sflag, size = 0x4, scoped, tag = 'scoped memory for tpu_custom_call.1']
    #allocation7 [shape = 'u8[512]{0}', space=vmem, size = 0x400, scoped, tag = 'input window, operand 2, single buffered']
    #allocation8 [shape = 'u8[131072]{0}', space=vmem, size = 0x20000, scoped, tag = 'output window, operand 0']
    %8 = vsyncpa [#allocation3], 0
    %s9 = scalar_lea.sflag [#allocation3], 1
    %10 = vsyncpa %s9, 0
    %11 = vsyncpa [#allocation6], 0
    %12 = vsyncpa [#allocation4], 0
    %s13 = scalar_lea.sflag [#allocation4], 1
    %14 = vsyncpa %s13, 0
    loop: start=0, step=1, limit=4
    $region2: #{tpu_custom_call.1} parent=1 // loop_pre_header
      _
    $region3: #{tpu_custom_call.1} parent=1 // loop_header
      %s16 = sphi 0, %s20
      %p17 = scmp.ge.s32.totalorder %s16, 4
      %s23 = sphi 0, %s35
      %s24 = sphi 0, %s31
      %s25 = sphi 0, %s23
      %s26 = sphi 0, %s24
      %s27 = sphi 0, %s25
      %s28 = sphi 0, %s26
      %s38 = sphi 0, %s40
      %s41 = sphi 0, %s38
      %s42 = sphi 0, %s41
      %s58 = sphi 0, %s42
      %s64 = sphi 0, %s66
      %s67 = sphi 0, %s64
      %s68 = sphi 0, %s67
      %s84 = sphi 0, %s68
      %s90 = sphi 0, %s92
      %s93 = sphi 0, %s90
      %s94 = sphi 0, %s93
      %s110 = sphi 0, %s94
      %s118 = sphi 0, %s120
      %s121 = sphi 0, %s118
      %s122 = sphi 0, %s121
      %s138 = sphi 0, %s122
    $region4: #{tpu_custom_call.1} parent=1 // loop_header_branch
      %19 = sbr.rel (%p17) target = $region8
    $region5: #{tpu_custom_call.1} parent=1 // loop_body
      %s21 = ssub.s32 %s16, 1
      %s22 = ssub.s32 %s16, 2
      %s29 = sadd.s32 1, %s24
      %p30 = scmp.ge.s32.totalorder %s29, 1
      %s31 = scalar_select %p30, 0, %s29
      %s32 = sadd.s32 1, %s23
      %s33 = scalar_select %p30, %s32, %s23
      %p34 = scmp.ge.s32.totalorder %s33, 2
      %s35 = scalar_select %p34, 0, %s33
      %s36 = ssub.s32 %s23, %s35
      %p37 = scmp.eq.s32.totalorder %s36, 0
      %s39 = sadd.s32 %s38, 1
      %s40 = scalar_select %p37, %s38, %s39
      %p43 = pneg %p37
      %p44 = scmp.eq.s32.totalorder %s16, 1
      %p45 = por %p43, %p44
      %p46 = scmp.ne.s32.totalorder %s38, %s41
      %p47 = scmp.eq.s32.totalorder %s16, 0
      %p48 = por %p46, %p47
      %p49 = scmp.ne.s32.totalorder %s38, %s41
      %p50 = scmp.eq.s32.totalorder %s21, 1
      %p51 = por %p49, %p50
      %p52 = scmp.ne.s32.totalorder %s41, %s42
      %p53 = scmp.eq.s32.totalorder %s21, 0
      %p54 = por %p52, %p53
      %p55 = scmp.ne.s32.totalorder %s41, %s42
      %p56 = scmp.eq.s32.totalorder %s22, 1
      %p57 = por %p55, %p56
      %p59 = scmp.ne.s32.totalorder %s42, %s58
      %p60 = scmp.eq.s32.totalorder %s22, 0
      %p61 = por %p59, %p60
      %s62 = ssub.s32 %s24, %s31
      %p63 = scmp.eq.s32.totalorder %s62, 0
      %s65 = sadd.s32 %s64, 1
      %s66 = scalar_select %p63, %s64, %s65
      %p69 = pneg %p63
      %p70 = scmp.eq.s32.totalorder %s16, 1
      %p71 = por %p69, %p70
      %p72 = scmp.ne.s32.totalorder %s64, %s67
      %p73 = scmp.eq.s32.totalorder %s16, 0
      %p74 = por %p72, %p73
      %p75 = scmp.ne.s32.totalorder %s64, %s67
      %p76 = scmp.eq.s32.totalorder %s21, 1
      %p77 = por %p75, %p76
      %p78 = scmp.ne.s32.totalorder %s67, %s68
      %p79 = scmp.eq.s32.totalorder %s21, 0
      %p80 = por %p78, %p79
      %p81 = scmp.ne.s32.totalorder %s67, %s68
      %p82 = scmp.eq.s32.totalorder %s22, 1
      %p83 = por %p81, %p82
      %p85 = scmp.ne.s32.totalorder %s68, %s84
      %p86 = scmp.eq.s32.totalorder %s22, 0
      %p87 = por %p85, %p86
      %s88 = ssub.s32 %s24, %s31
      %p89 = scmp.eq.s32.totalorder %s88, 0
      %s91 = sadd.s32 %s90, 1
      %s92 = scalar_select %p89, %s90, %s91
      %p95 = pneg %p89
      %p96 = scmp.eq.s32.totalorder %s16, 1
      %p97 = por %p95, %p96
      %p98 = scmp.ne.s32.totalorder %s90, %s93
      %p99 = scmp.eq.s32.totalorder %s16, 0
      %p100 = por %p98, %p99
      %p101 = scmp.ne.s32.totalorder %s90, %s93
      %p102 = scmp.eq.s32.totalorder %s21, 1
      %p103 = por %p101, %p102
      %p104 = scmp.ne.s32.totalorder %s93, %s94
      %p105 = scmp.eq.s32.totalorder %s21, 0
      %p106 = por %p104, %p105
      %p107 = scmp.ne.s32.totalorder %s93, %s94
      %p108 = scmp.eq.s32.totalorder %s22, 1
      %p109 = por %p107, %p108
      %p111 = scmp.ne.s32.totalorder %s94, %s110
      %p112 = scmp.eq.s32.totalorder %s22, 0
      %p113 = por %p111, %p112
      %s114 = ssub.s32 %s23, %s35
      %s115 = ssub.s32 %s24, %s31
      %s116 = sor.u32 %s114, %s115
      %p117 = scmp.eq.s32.totalorder %s116, 0
      %s119 = sadd.s32 %s118, 1
      %s120 = scalar_select %p117, %s118, %s119
      %p123 = pneg %p117
      %p124 = scmp.eq.s32.totalorder %s16, 1
      %p125 = por %p123, %p124
      %p126 = scmp.ne.s32.totalorder %s118, %s121
      %p127 = scmp.eq.s32.totalorder %s16, 0
      %p128 = por %p126, %p127
      %p129 = scmp.ne.s32.totalorder %s118, %s121
      %p130 = scmp.eq.s32.totalorder %s21, 1
      %p131 = por %p129, %p130
      %p132 = scmp.ne.s32.totalorder %s121, %s122
      %p133 = scmp.eq.s32.totalorder %s21, 0
      %p134 = por %p132, %p133
      %p135 = scmp.ne.s32.totalorder %s121, %s122
      %p136 = scmp.eq.s32.totalorder %s22, 1
      %p137 = por %p135, %p136
      %p139 = scmp.ne.s32.totalorder %s122, %s138
      %p140 = scmp.eq.s32.totalorder %s22, 0
      %p141 = por %p139, %p140
      %p142 = scmp.le.s32.totalorder 1, %s16
      %p143 = scmp.lt.s32.totalorder %s16, 3
      %p144 = pnand %p142, %p143
      %p145 = pneg %p144
      // Predicated region
      $region9: #{tpu_custom_call.1} parent=5 // pred_check
        _
      $region10: #{tpu_custom_call.1} parent=5 // pred_check_branch
        %147 = sbr.rel (%p144) target = $region12
      $region11: #{tpu_custom_call.1} parent=5 // pred_region
        %s148 = ssub.s32 %s16, 1
        // Predicated region
        $region13: #{tpu_custom_call.1} parent=11 // pred_check
          %p149 = pneg %p80
        $region14: #{tpu_custom_call.1} parent=11 // pred_check_branch
          %151 = sbr.rel (%p149) target = $region16
        $region15: #{tpu_custom_call.1} parent=11 // pred_region
          %s153 = ssub.s32 2048, 2048
          %154 = vsyncadd [#allocation6], %s153
          %s155 = smul.addr %s26, 64
          %s156 = scalar_lea.hbm %s1, %s155
          %s157 = sshll.u32 [#allocation5], 4
          %s158 = int_to_ptr.vmem [resolvable:$true] %s157
          %163 = dma.hbm_to_vmem [thread:$0]  %s156, 2048, %s158, [#allocation6], 64, 64, 4
        $region16: #{tpu_custom_call.1} parent=11 // pred_fallthru
          _
        // Predicated region
        $region17: #{tpu_custom_call.1} parent=11 // pred_check
          %p164 = pneg %p106
        $region18: #{tpu_custom_call.1} parent=11 // pred_check_branch
          %166 = sbr.rel (%p164) target = $region20
        $region19: #{tpu_custom_call.1} parent=11 // pred_region
          %s168 = ssub.s32 16, 16
          %169 = vsyncadd [#allocation6], %s168
          %s170 = smul.addr %s26, 16
          %s171 = scalar_lea.hbm %s2, %s170
          %s173 = sshll.u32 [#allocation7], 4
          %s174 = int_to_ptr.vmem [resolvable:$true] %s173
          %176 = dma.hbm_to_vmem [thread:$0]  %s171, 16, %s174, [#allocation6]
        $region20: #{tpu_custom_call.1} parent=11 // pred_fallthru
          _
      $region12: #{tpu_custom_call.1} parent=5 // pred_fallthru
        _
      %p177 = scmp.lt.s32.totalorder %s16, 2
      // Predicated region
      $region21: #{tpu_custom_call.1} parent=5 // pred_check
        %p178 = pneg %p177
      $region22: #{tpu_custom_call.1} parent=5 // pred_check_branch
        %180 = sbr.rel (%p178) target = $region24
      $region23: #{tpu_custom_call.1} parent=5 // pred_region
        // Predicated region
        $region25: #{tpu_custom_call.1} parent=23 // pred_check
          %p181 = pneg %p48
        $region26: #{tpu_custom_call.1} parent=23 // pred_check_branch
          %183 = sbr.rel (%p181) target = $region28
        $region27: #{tpu_custom_call.1} parent=23 // pred_region
          %s184 = sand.u32 %s38, 1
          %s185 = scalar_lea.sflag [#allocation3], %s184
          %s186 = sand.u32 %s38, 1
          %s187 = smul.addr %s186, 256
          %s188 = scalar_lea.vmem [#allocation2], %s187
          %s189 = smul.u32 32, %s23
          %s191 = ssub.s32 4096, 4096
          %192 = vsyncadd %s185, %s191
          %s193 = smul.addr %s189, 2
          %s194 = smul.addr %s193, 64
          %s195 = scalar_lea.hbm %s0, %s194
          %s196 = sshll.u32 %s188, 4
          %s197 = int_to_ptr.vmem [resolvable:$true] %s196
          %202 = dma.hbm_to_vmem [thread:$0]  %s195, 4096, %s197, %s185, 128, 128, 8
        $region28: #{tpu_custom_call.1} parent=23 // pred_fallthru
          _
      $region24: #{tpu_custom_call.1} parent=5 // pred_fallthru
        _
      %p203 = scmp.le.s32.totalorder 1, %s16
      %p204 = scmp.lt.s32.totalorder %s16, 3
      %p205 = pnand %p203, %p204
      %p206 = pneg %p205
      // Predicated region
      $region29: #{tpu_custom_call.1} parent=5 // pred_check
        _
      $region30: #{tpu_custom_call.1} parent=5 // pred_check_branch
        %208 = sbr.rel (%p205) target = $region32
      $region31: #{tpu_custom_call.1} parent=5 // pred_region
        %s209 = ssub.s32 %s16, 1
        %s210 = sand.u32 %s41, 1
        %s211 = scalar_lea.sflag [#allocation3], %s210
        %s212 = sand.u32 %s41, 1
        %s213 = smul.addr %s212, 256
        %s214 = scalar_lea.vmem [#allocation2], %s213
        // Predicated region
        $region33: #{tpu_custom_call.1} parent=31 // pred_check
          %p215 = pneg %p54
        $region34: #{tpu_custom_call.1} parent=31 // pred_check_branch
          %217 = sbr.rel (%p215) target = $region36
        $region35: #{tpu_custom_call.1} parent=31 // pred_region
          %218 = dma.done %s211, 4096
        $region36: #{tpu_custom_call.1} parent=31 // pred_fallthru
          _
        // Predicated region
        $region37: #{tpu_custom_call.1} parent=31 // pred_check
          %p219 = pneg %p80
        $region38: #{tpu_custom_call.1} parent=31 // pred_check_branch
          %221 = sbr.rel (%p219) target = $region40
        $region39: #{tpu_custom_call.1} parent=31 // pred_region
          %222 = dma.done [#allocation6], 2048
        $region40: #{tpu_custom_call.1} parent=31 // pred_fallthru
          _
        // Predicated region
        $region41: #{tpu_custom_call.1} parent=31 // pred_check
          %p223 = pneg %p106
        $region42: #{tpu_custom_call.1} parent=31 // pred_check_branch
          %225 = sbr.rel (%p223) target = $region44
        $region43: #{tpu_custom_call.1} parent=31 // pred_region
          %226 = dma.done [#allocation6], 16
        $region44: #{tpu_custom_call.1} parent=31 // pred_fallthru
          _
        %s227 = sand.u32 %s41, 1
        %s228 = scalar_lea.sflag [#allocation3], %s227
        %s229 = sand.u32 %s41, 1
        %s230 = smul.addr %s229, 256
        %s231 = scalar_lea.vmem [#allocation2], %s230
        %p232 = pneg %p54
        %p233 = pneg %p51
        %p234 = pneg %p80
        %p235 = pneg %p77
        %p236 = pneg %p106
        %p237 = pneg %p103
        %p238 = pneg %p134
        %p239 = pneg %p131
        %s240 = sand.u32 %s121, 1
        %s241 = scalar_lea.sflag [#allocation4], %s240
        %s242 = sand.u32 %s121, 1
        %s243 = smul.addr %s242, 128
        %s244 = scalar_lea.vmem [#allocation8], %s243
        %s245 = smul.u32 32, %s25
        %s246 = smul.u32 32, %s25
        %v248 = vld [vmem:[%s214] sm:$0xff]
        %v249 = vld [vmem:[%s214 + $0x8] sm:$0xff]
        %v250 = vld [vmem:[%s214 + $0x10] sm:$0xff]
        %v251 = vld [vmem:[%s214 + $0x18] sm:$0xff]
        %v252 = vld [vmem:[%s214 + $0x20] sm:$0xff]
        %v253 = vld [vmem:[%s214 + $0x28] sm:$0xff]
        %v254 = vld [vmem:[%s214 + $0x30] sm:$0xff]
        %v255 = vld [vmem:[%s214 + $0x38] sm:$0xff]
        %v256 = vld [vmem:[%s214 + $0x40] sm:$0xff]
        %v257 = vld [vmem:[%s214 + $0x48] sm:$0xff]
        %v258 = vld [vmem:[%s214 + $0x50] sm:$0xff]
        %v259 = vld [vmem:[%s214 + $0x58] sm:$0xff]
        %v260 = vld [vmem:[%s214 + $0x60] sm:$0xff]
        %v261 = vld [vmem:[%s214 + $0x68] sm:$0xff]
        %v262 = vld [vmem:[%s214 + $0x70] sm:$0xff]
        %v263 = vld [vmem:[%s214 + $0x78] sm:$0xff]
        %v264 = vld [vmem:[%s214 + $0x80] sm:$0xff]
        %v265 = vld [vmem:[%s214 + $0x88] sm:$0xff]
        %v266 = vld [vmem:[%s214 + $0x90] sm:$0xff]
        %v267 = vld [vmem:[%s214 + $0x98] sm:$0xff]
        %v268 = vld [vmem:[%s214 + $0xa0] sm:$0xff]
        %v269 = vld [vmem:[%s214 + $0xa8] sm:$0xff]
        %v270 = vld [vmem:[%s214 + $0xb0] sm:$0xff]
        %v271 = vld [vmem:[%s214 + $0xb8] sm:$0xff]
        %v272 = vld [vmem:[%s214 + $0xc0] sm:$0xff]
        %v273 = vld [vmem:[%s214 + $0xc8] sm:$0xff]
        %v274 = vld [vmem:[%s214 + $0xd0] sm:$0xff]
        %v275 = vld [vmem:[%s214 + $0xd8] sm:$0xff]
        %v276 = vld [vmem:[%s214 + $0xe0] sm:$0xff]
        %v277 = vld [vmem:[%s214 + $0xe8] sm:$0xff]
        %v278 = vld [vmem:[%s214 + $0xf0] sm:$0xff]
        %v279 = vld [vmem:[%s214 + $0xf8] sm:$0xff]
        %v280 = vld [vmem:[#allocation5] sm:$0xf]
        %v281 = vld [vmem:[#allocation5 + $0x4] sm:$0xf]
        %v282 = vld [vmem:[#allocation5 + $0x8] sm:$0xf]
        %v283 = vld [vmem:[#allocation5 + $0xc] sm:$0xf]
        %v284 = vld [vmem:[#allocation5 + $0x10] sm:$0xf]
        %v285 = vld [vmem:[#allocation5 + $0x14] sm:$0xf]
        %v286 = vld [vmem:[#allocation5 + $0x18] sm:$0xf]
        %v287 = vld [vmem:[#allocation5 + $0x1c] sm:$0xf]
        %v288 = vld [vmem:[#allocation5 + $0x20] sm:$0xf]
        %v289 = vld [vmem:[#allocation5 + $0x24] sm:$0xf]
        %v290 = vld [vmem:[#allocation5 + $0x28] sm:$0xf]
        %v291 = vld [vmem:[#allocation5 + $0x2c] sm:$0xf]
        %v292 = vld [vmem:[#allocation5 + $0x30] sm:$0xf]
        %v293 = vld [vmem:[#allocation5 + $0x34] sm:$0xf]
        %v294 = vld [vmem:[#allocation5 + $0x38] sm:$0xf]
        %v295 = vld [vmem:[#allocation5 + $0x3c] sm:$0xf]
        %v296 = vld [vmem:[#allocation5 + $0x40] sm:$0xf]
        %v297 = vld [vmem:[#allocation5 + $0x44] sm:$0xf]
        %v298 = vld [vmem:[#allocation5 + $0x48] sm:$0xf]
        %v299 = vld [vmem:[#allocation5 + $0x4c] sm:$0xf]
        %v300 = vld [vmem:[#allocation5 + $0x50] sm:$0xf]
        %v301 = vld [vmem:[#allocation5 + $0x54] sm:$0xf]
        %v302 = vld [vmem:[#allocation5 + $0x58] sm:$0xf]
        %v303 = vld [vmem:[#allocation5 + $0x5c] sm:$0xf]
        %v304 = vld [vmem:[#allocation5 + $0x60] sm:$0xf]
        %v305 = vld [vmem:[#allocation5 + $0x64] sm:$0xf]
        %v306 = vld [vmem:[#allocation5 + $0x68] sm:$0xf]
        %v307 = vld [vmem:[#allocation5 + $0x6c] sm:$0xf]
        %v308 = vld [vmem:[#allocation5 + $0x70] sm:$0xf]
        %v309 = vld [vmem:[#allocation5 + $0x74] sm:$0xf]
        %v310 = vld [vmem:[#allocation5 + $0x78] sm:$0xf]
        %v311 = vld [vmem:[#allocation5 + $0x7c] sm:$0xf]
        %v312 = vld [vmem:[#allocation7] sm:$0x1]
        %v314 = vlaneseq
        %v315 = vshrl.u32 %v314, 7
        %v316 = vsub.s32 0, %v315
        %v317 = vrot.slane %v312, %v316
        %v351 = vunpack.c.l.b16 %v248
        %v352 = vunpack.c.h.b16 %v248
        %v353 = vunpack.c.l.b16 %v249
        %v354 = vunpack.c.h.b16 %v249
        %v355 = vunpack.c.l.b16 %v250
        %v356 = vunpack.c.h.b16 %v250
        %v357 = vunpack.c.l.b16 %v251
        %v358 = vunpack.c.h.b16 %v251
        %v359 = vunpack.c.l.b16 %v252
        %v360 = vunpack.c.h.b16 %v252
        %v361 = vunpack.c.l.b16 %v253
        %v362 = vunpack.c.h.b16 %v253
        %v363 = vunpack.c.l.b16 %v254
        %v364 = vunpack.c.h.b16 %v254
        %v365 = vunpack.c.l.b16 %v255
        %v366 = vunpack.c.h.b16 %v255
        %v367 = vunpack.c.l.b16 %v256
        %v368 = vunpack.c.h.b16 %v256
        %v369 = vunpack.c.l.b16 %v257
        %v370 = vunpack.c.h.b16 %v257
        %v371 = vunpack.c.l.b16 %v258
        %v372 = vunpack.c.h.b16 %v258
        %v373 = vunpack.c.l.b16 %v259
        %v374 = vunpack.c.h.b16 %v259
        %v375 = vunpack.c.l.b16 %v260
        %v376 = vunpack.c.h.b16 %v260
        %v377 = vunpack.c.l.b16 %v261
        %v378 = vunpack.c.h.b16 %v261
        %v379 = vunpack.c.l.b16 %v262
        %v380 = vunpack.c.h.b16 %v262
        %v381 = vunpack.c.l.b16 %v263
        %v382 = vunpack.c.h.b16 %v263
        %v383 = vunpack.c.l.b16 %v264
        %v384 = vunpack.c.h.b16 %v264
        %v385 = vunpack.c.l.b16 %v265
        %v386 = vunpack.c.h.b16 %v265
        %v387 = vunpack.c.l.b16 %v266
        %v388 = vunpack.c.h.b16 %v266
        %v389 = vunpack.c.l.b16 %v267
        %v390 = vunpack.c.h.b16 %v267
        %v391 = vunpack.c.l.b16 %v268
        %v392 = vunpack.c.h.b16 %v268
        %v393 = vunpack.c.l.b16 %v269
        %v394 = vunpack.c.h.b16 %v269
        %v395 = vunpack.c.l.b16 %v270
        %v396 = vunpack.c.h.b16 %v270
        %v397 = vunpack.c.l.b16 %v271
        %v398 = vunpack.c.h.b16 %v271
        %v399 = vunpack.c.l.b16 %v272
        %v400 = vunpack.c.h.b16 %v272
        %v401 = vunpack.c.l.b16 %v273
        %v402 = vunpack.c.h.b16 %v273
        %v403 = vunpack.c.l.b16 %v274
        %v404 = vunpack.c.h.b16 %v274
        %v405 = vunpack.c.l.b16 %v275
        %v406 = vunpack.c.h.b16 %v275
        %v407 = vunpack.c.l.b16 %v276
        %v408 = vunpack.c.h.b16 %v276
        %v409 = vunpack.c.l.b16 %v277
        %v410 = vunpack.c.h.b16 %v277
        %v411 = vunpack.c.l.b16 %v278
        %v412 = vunpack.c.h.b16 %v278
        %v413 = vunpack.c.l.b16 %v279
        %v414 = vunpack.c.h.b16 %v279
        %v415 = vpack.c.b16 %v353, %v351
        %v416 = vpack.c.b16 %v354, %v352
        %v417 = vpack.c.b16 %v357, %v355
        %v418 = vpack.c.b16 %v358, %v356
        %v419 = vpack.c.b16 %v361, %v359
        %v420 = vpack.c.b16 %v362, %v360
        %v421 = vpack.c.b16 %v365, %v363
        %v422 = vpack.c.b16 %v366, %v364
        %v423 = vpack.c.b16 %v369, %v367
        %v424 = vpack.c.b16 %v370, %v368
        %v425 = vpack.c.b16 %v373, %v371
        %v426 = vpack.c.b16 %v374, %v372
        %v427 = vpack.c.b16 %v377, %v375
        %v428 = vpack.c.b16 %v378, %v376
        %v429 = vpack.c.b16 %v381, %v379
        %v430 = vpack.c.b16 %v382, %v380
        %v431 = vpack.c.b16 %v385, %v383
        %v432 = vpack.c.b16 %v386, %v384
        %v433 = vpack.c.b16 %v389, %v387
        %v434 = vpack.c.b16 %v390, %v388
        %v435 = vpack.c.b16 %v393, %v391
        %v436 = vpack.c.b16 %v394, %v392
        %v437 = vpack.c.b16 %v397, %v395
        %v438 = vpack.c.b16 %v398, %v396
        %v439 = vpack.c.b16 %v401, %v399
        %v440 = vpack.c.b16 %v402, %v400
        %v441 = vpack.c.b16 %v405, %v403
        %v442 = vpack.c.b16 %v406, %v404
        %v443 = vpack.c.b16 %v409, %v407
        %v444 = vpack.c.b16 %v410, %v408
        %v445 = vpack.c.b16 %v413, %v411
        %v446 = vpack.c.b16 %v414, %v412
        %v511 = vunpack.c.l.b16 %v280
        %v512 = vunpack.c.l.b16 %v281
        %v513 = vunpack.c.l.b16 %v282
        %v514 = vunpack.c.l.b16 %v283
        %v515 = vunpack.c.l.b16 %v284
        %v516 = vunpack.c.l.b16 %v285
        %v517 = vunpack.c.l.b16 %v286
        %v518 = vunpack.c.l.b16 %v287
        %v519 = vunpack.c.l.b16 %v288
        %v520 = vunpack.c.l.b16 %v289
        %v521 = vunpack.c.l.b16 %v290
        %v522 = vunpack.c.l.b16 %v291
        %v523 = vunpack.c.l.b16 %v292
        %v524 = vunpack.c.l.b16 %v293
        %v525 = vunpack.c.l.b16 %v294
        %v526 = vunpack.c.l.b16 %v295
        %v527 = vunpack.c.l.b16 %v296
        %v528 = vunpack.c.l.b16 %v297
        %v529 = vunpack.c.l.b16 %v298
        %v530 = vunpack.c.l.b16 %v299
        %v531 = vunpack.c.l.b16 %v300
        %v532 = vunpack.c.l.b16 %v301
        %v533 = vunpack.c.l.b16 %v302
        %v534 = vunpack.c.l.b16 %v303
        %v535 = vunpack.c.l.b16 %v304
        %v536 = vunpack.c.l.b16 %v305
        %v537 = vunpack.c.l.b16 %v306
        %v538 = vunpack.c.l.b16 %v307
        %v539 = vunpack.c.l.b16 %v308
        %v540 = vunpack.c.l.b16 %v309
        %v541 = vunpack.c.l.b16 %v310
        %v542 = vunpack.c.l.b16 %v311
        %v543 = vpack.c.b16 %v512, %v511
        %v544 = vpack.c.b16 %v514, %v513
        %v545 = vpack.c.b16 %v516, %v515
        %v546 = vpack.c.b16 %v518, %v517
        %v547 = vpack.c.b16 %v520, %v519
        %v548 = vpack.c.b16 %v522, %v521
        %v549 = vpack.c.b16 %v524, %v523
        %v550 = vpack.c.b16 %v526, %v525
        %v551 = vpack.c.b16 %v528, %v527
        %v552 = vpack.c.b16 %v530, %v529
        %v553 = vpack.c.b16 %v532, %v531
        %v554 = vpack.c.b16 %v534, %v533
        %v555 = vpack.c.b16 %v536, %v535
        %v556 = vpack.c.b16 %v538, %v537
        %v557 = vpack.c.b16 %v540, %v539
        %v558 = vpack.c.b16 %v542, %v541
        %575 = vmatprep.subr.bf16.mxu0 0
        %576 = vmatpush1.bf16.msra.mxu0 %v543
        %577 = vmatprep.subr.bf16.mxu0 0
        %578 = vmatpush1.bf16.msra.mxu0 %v544
        %579 = vmatprep.subr.bf16.mxu0 0
        %580 = vmatpush1.bf16.msra.mxu0 %v545
        %581 = vmatprep.subr.bf16.mxu0 0
        %582 = vmatpush1.bf16.msra.mxu0 %v546
        %583 = vmatprep.subr.bf16.mxu0 0
        %584 = vmatpush1.bf16.msra.mxu0 %v547
        %585 = vmatprep.subr.bf16.mxu0 0
        %586 = vmatpush1.bf16.msra.mxu0 %v548
        %587 = vmatprep.subr.bf16.mxu0 0
        %588 = vmatpush1.bf16.msra.mxu0 %v549
        %589 = vmatprep.subr.bf16.mxu0 0
        %590 = vmatpush1.bf16.msra.mxu0 %v550
        %591 = vmatprep.subr.bf16.mxu0 0
        %592 = vmatpush1.bf16.msra.mxu0 %v551
        %593 = vmatprep.subr.bf16.mxu0 0
        %594 = vmatpush1.bf16.msra.mxu0 %v552
        %595 = vmatprep.subr.bf16.mxu0 0
        %596 = vmatpush1.bf16.msra.mxu0 %v553
        %597 = vmatprep.subr.bf16.mxu0 0
        %598 = vmatpush1.bf16.msra.mxu0 %v554
        %599 = vmatprep.subr.bf16.mxu0 0
        %600 = vmatpush1.bf16.msra.mxu0 %v555
        %601 = vmatprep.subr.bf16.mxu0 0
        %602 = vmatpush1.bf16.msra.mxu0 %v556
        %603 = vmatprep.subr.bf16.mxu0 0
        %604 = vmatpush1.bf16.msra.mxu0 %v557
        %605 = vmatprep.subr.bf16.mxu0 0
        %606 = vmatpush1.bf16.msra.mxu0 %v558
        %607 = vmatprep.mubr.bf16.mxu0 %v416
        %608 = vmatmul.mubr.bf16.gmra.mrb[0].mxu0 %v415
        %v609 = vpop.f32.mrb[0].mxu0
        %v610 = vadd.f32 %v317, %v609
        %v611 = vpop.f32.mrb[0].mxu0
        %v612 = vpop.f32.mrb[0].mxu0
        %v613 = vadd.f32 %v317, %v612
        %v614 = vpop.f32.mrb[0].mxu0
        %615 = vmatprep.mubr.bf16.mxu0 %v418
        %616 = vmatmul.mubr.bf16.gmra.mrb[0].mxu0 %v417
        %v617 = vpop.f32.mrb[0].mxu0
        %v618 = vadd.f32 %v317, %v617
        %v619 = vpop.f32.mrb[0].mxu0
        %v620 = vpop.f32.mrb[0].mxu0
        %v621 = vadd.f32 %v317, %v620
        %v622 = vpop.f32.mrb[0].mxu0
        %623 = vmatprep.mubr.bf16.mxu0 %v420
        %624 = vmatmul.mubr.bf16.gmra.mrb[0].mxu0 %v419
        %v625 = vpop.f32.mrb[0].mxu0
        %v626 = vadd.f32 %v317, %v625
        %v627 = vpop.f32.mrb[0].mxu0
        %v628 = vpop.f32.mrb[0].mxu0
        %v629 = vadd.f32 %v317, %v628
        %v630 = vpop.f32.mrb[0].mxu0
        %631 = vmatprep.mubr.bf16.mxu0 %v422
        %632 = vmatmul.mubr.bf16.gmra.mrb[0].mxu0 %v421
        %v633 = vpop.f32.mrb[0].mxu0
        %v634 = vadd.f32 %v317, %v633
        %v635 = vpop.f32.mrb[0].mxu0
        %v636 = vpop.f32.mrb[0].mxu0
        %v637 = vadd.f32 %v317, %v636
        %v638 = vpop.f32.mrb[0].mxu0
        %639 = vmatprep.mubr.bf16.mxu0 %v424
        %640 = vmatmul.mubr.bf16.gmra.mrb[0].mxu0 %v423
        %v641 = vpop.f32.mrb[0].mxu0
        %v642 = vadd.f32 %v317, %v641
        %v643 = vpop.f32.mrb[0].mxu0
        %v644 = vpop.f32.mrb[0].mxu0
        %v645 = vadd.f32 %v317, %v644
        %v646 = vpop.f32.mrb[0].mxu0
        %647 = vmatprep.mubr.bf16.mxu0 %v426
        %648 = vmatmul.mubr.bf16.gmra.mrb[0].mxu0 %v425
        %v649 = vpop.f32.mrb[0].mxu0
        %v650 = vadd.f32 %v317, %v649
        %v651 = vpop.f32.mrb[0].mxu0
        %v652 = vpop.f32.mrb[0].mxu0
        %v653 = vadd.f32 %v317, %v652
        %v654 = vpop.f32.mrb[0].mxu0
        %655 = vmatprep.mubr.bf16.mxu0 %v428
        %656 = vmatmul.mubr.bf16.gmra.mrb[0].mxu0 %v427
        %v657 = vpop.f32.mrb[0].mxu0
        %v658 = vadd.f32 %v317, %v657
        %v659 = vpop.f32.mrb[0].mxu0
        %v660 = vpop.f32.mrb[0].mxu0
        %v661 = vadd.f32 %v317, %v660
        %v662 = vpop.f32.mrb[0].mxu0
        %663 = vmatprep.mubr.bf16.mxu0 %v430
        %664 = vmatmul.mubr.bf16.gmra.mrb[0].mxu0 %v429
        %v665 = vpop.f32.mrb[0].mxu0
        %v666 = vadd.f32 %v317, %v665
        %v667 = vpop.f32.mrb[0].mxu0
        %v668 = vpop.f32.mrb[0].mxu0
        %v669 = vadd.f32 %v317, %v668
        %v670 = vpop.f32.mrb[0].mxu0
        %671 = vmatprep.mubr.bf16.mxu0 %v432
        %672 = vmatmul.mubr.bf16.gmra.mrb[0].mxu0 %v431
        %v673 = vpop.f32.mrb[0].mxu0
        %v674 = vadd.f32 %v317, %v673
        %v675 = vpop.f32.mrb[0].mxu0
        %v676 = vpop.f32.mrb[0].mxu0
        %v677 = vadd.f32 %v317, %v676
        %v678 = vpop.f32.mrb[0].mxu0
        %679 = vmatprep.mubr.bf16.mxu0 %v434
        %680 = vmatmul.mubr.bf16.gmra.mrb[0].mxu0 %v433
        %v681 = vpop.f32.mrb[0].mxu0
        %v682 = vadd.f32 %v317, %v681
        %v683 = vpop.f32.mrb[0].mxu0
        %v684 = vpop.f32.mrb[0].mxu0
        %v685 = vadd.f32 %v317, %v684
        %v686 = vpop.f32.mrb[0].mxu0
        %687 = vmatprep.mubr.bf16.mxu0 %v436
        %688 = vmatmul.mubr.bf16.gmra.mrb[0].mxu0 %v435
        %v689 = vpop.f32.mrb[0].mxu0
        %v690 = vadd.f32 %v317, %v689
        %v691 = vpop.f32.mrb[0].mxu0
        %v692 = vpop.f32.mrb[0].mxu0
        %v693 = vadd.f32 %v317, %v692
        %v694 = vpop.f32.mrb[0].mxu0
        %695 = vmatprep.mubr.bf16.mxu0 %v438
        %696 = vmatmul.mubr.bf16.gmra.mrb[0].mxu0 %v437
        %v697 = vpop.f32.mrb[0].mxu0
        %v698 = vadd.f32 %v317, %v697
        %v699 = vpop.f32.mrb[0].mxu0
        %v700 = vpop.f32.mrb[0].mxu0
        %v701 = vadd.f32 %v317, %v700
        %v702 = vpop.f32.mrb[0].mxu0
        %703 = vmatprep.mubr.bf16.mxu0 %v440
        %704 = vmatmul.mubr.bf16.gmra.mrb[0].mxu0 %v439
        %v705 = vpop.f32.mrb[0].mxu0
        %v706 = vadd.f32 %v317, %v705
        %v707 = vpop.f32.mrb[0].mxu0
        %v708 = vpop.f32.mrb[0].mxu0
        %v709 = vadd.f32 %v317, %v708
        %v710 = vpop.f32.mrb[0].mxu0
        %711 = vmatprep.mubr.bf16.mxu0 %v442
        %712 = vmatmul.mubr.bf16.gmra.mrb[0].mxu0 %v441
        %v713 = vpop.f32.mrb[0].mxu0
        %v714 = vadd.f32 %v317, %v713
        %v715 = vpop.f32.mrb[0].mxu0
        %v716 = vpop.f32.mrb[0].mxu0
        %v717 = vadd.f32 %v317, %v716
        %v718 = vpop.f32.mrb[0].mxu0
        %719 = vmatprep.mubr.bf16.mxu0 %v444
        %720 = vmatmul.mubr.bf16.gmra.mrb[0].mxu0 %v443
        %v721 = vpop.f32.mrb[0].mxu0
        %v722 = vadd.f32 %v317, %v721
        %v723 = vpop.f32.mrb[0].mxu0
        %v724 = vpop.f32.mrb[0].mxu0
        %v725 = vadd.f32 %v317, %v724
        %v726 = vpop.f32.mrb[0].mxu0
        %727 = vmatprep.mubr.bf16.mxu0 %v446
        %728 = vmatmul.mubr.bf16.gmra.mrb[0].mxu0 %v445
        %v729 = vpop.f32.mrb[0].mxu0
        %v730 = vadd.f32 %v317, %v729
        %v731 = vpop.f32.mrb[0].mxu0
        %v732 = vpop.f32.mrb[0].mxu0
        %v733 = vadd.f32 %v317, %v732
        %v734 = vpop.f32.mrb[0].mxu0
        %735 = vdwg.mxu0
        %v736 = vmax.f32 %v610, 0.0
        %v737 = vmax.f32 %v613, 0.0
        %v738 = vmax.f32 %v618, 0.0
        %v739 = vmax.f32 %v621, 0.0
        %v740 = vmax.f32 %v626, 0.0
        %v741 = vmax.f32 %v629, 0.0
        %v742 = vmax.f32 %v634, 0.0
        %v743 = vmax.f32 %v637, 0.0
        %v744 = vmax.f32 %v642, 0.0
        %v745 = vmax.f32 %v645, 0.0
        %v746 = vmax.f32 %v650, 0.0
        %v747 = vmax.f32 %v653, 0.0
        %v748 = vmax.f32 %v658, 0.0
        %v749 = vmax.f32 %v661, 0.0
        %v750 = vmax.f32 %v666, 0.0
        %v751 = vmax.f32 %v669, 0.0
        %v752 = vmax.f32 %v674, 0.0
        %v753 = vmax.f32 %v677, 0.0
        %v754 = vmax.f32 %v682, 0.0
        %v755 = vmax.f32 %v685, 0.0
        %v756 = vmax.f32 %v690, 0.0
        %v757 = vmax.f32 %v693, 0.0
        %v758 = vmax.f32 %v698, 0.0
        %v759 = vmax.f32 %v701, 0.0
        %v760 = vmax.f32 %v706, 0.0
        %v761 = vmax.f32 %v709, 0.0
        %v762 = vmax.f32 %v714, 0.0
        %v763 = vmax.f32 %v717, 0.0
        %v764 = vmax.f32 %v722, 0.0
        %v765 = vmax.f32 %v725, 0.0
        %v766 = vmax.f32 %v730, 0.0
        %v767 = vmax.f32 %v733, 0.0
        %v768 = vpack.c.bf16 %v737, %v736
        %v769 = vpack.c.bf16 %v739, %v738
        %v770 = vpack.c.bf16 %v741, %v740
        %v771 = vpack.c.bf16 %v743, %v742
        %v772 = vpack.c.bf16 %v745, %v744
        %v773 = vpack.c.bf16 %v747, %v746
        %v774 = vpack.c.bf16 %v749, %v748
        %v775 = vpack.c.bf16 %v751, %v750
        %v776 = vpack.c.bf16 %v753, %v752
        %v777 = vpack.c.bf16 %v755, %v754
        %v778 = vpack.c.bf16 %v757, %v756
        %v779 = vpack.c.bf16 %v759, %v758
        %v780 = vpack.c.bf16 %v761, %v760
        %v781 = vpack.c.bf16 %v763, %v762
        %v782 = vpack.c.bf16 %v765, %v764
        %v783 = vpack.c.bf16 %v767, %v766
        %v800 = vunpack.c.l.b16 %v768
        %v801 = vunpack.c.h.b16 %v768
        %v802 = vunpack.c.l.b16 %v769
        %v803 = vunpack.c.h.b16 %v769
        %v804 = vunpack.c.l.b16 %v770
        %v805 = vunpack.c.h.b16 %v770
        %v806 = vunpack.c.l.b16 %v771
        %v807 = vunpack.c.h.b16 %v771
        %v808 = vunpack.c.l.b16 %v772
        %v809 = vunpack.c.h.b16 %v772
        %v810 = vunpack.c.l.b16 %v773
        %v811 = vunpack.c.h.b16 %v773
        %v812 = vunpack.c.l.b16 %v774
        %v813 = vunpack.c.h.b16 %v774
        %v814 = vunpack.c.l.b16 %v775
        %v815 = vunpack.c.h.b16 %v775
        %v816 = vunpack.c.l.b16 %v776
        %v817 = vunpack.c.h.b16 %v776
        %v818 = vunpack.c.l.b16 %v777
        %v819 = vunpack.c.h.b16 %v777
        %v820 = vunpack.c.l.b16 %v778
        %v821 = vunpack.c.h.b16 %v778
        %v822 = vunpack.c.l.b16 %v779
        %v823 = vunpack.c.h.b16 %v779
        %v824 = vunpack.c.l.b16 %v780
        %v825 = vunpack.c.h.b16 %v780
        %v826 = vunpack.c.l.b16 %v781
        %v827 = vunpack.c.h.b16 %v781
        %v828 = vunpack.c.l.b16 %v782
        %v829 = vunpack.c.h.b16 %v782
        %v830 = vunpack.c.l.b16 %v783
        %v831 = vunpack.c.h.b16 %v783
        %v832 = vpack.c.b16 %v800, %v800
        %v833 = vpack.c.b16 %v801, %v801
        %v834 = vpack.c.b16 %v802, %v802
        %v835 = vpack.c.b16 %v803, %v803
        %v836 = vpack.c.b16 %v804, %v804
        %v837 = vpack.c.b16 %v805, %v805
        %v838 = vpack.c.b16 %v806, %v806
        %v839 = vpack.c.b16 %v807, %v807
        %v840 = vpack.c.b16 %v808, %v808
        %v841 = vpack.c.b16 %v809, %v809
        %v842 = vpack.c.b16 %v810, %v810
        %v843 = vpack.c.b16 %v811, %v811
        %v844 = vpack.c.b16 %v812, %v812
        %v845 = vpack.c.b16 %v813, %v813
        %v846 = vpack.c.b16 %v814, %v814
        %v847 = vpack.c.b16 %v815, %v815
        %v848 = vpack.c.b16 %v816, %v816
        %v849 = vpack.c.b16 %v817, %v817
        %v850 = vpack.c.b16 %v818, %v818
        %v851 = vpack.c.b16 %v819, %v819
        %v852 = vpack.c.b16 %v820, %v820
        %v853 = vpack.c.b16 %v821, %v821
        %v854 = vpack.c.b16 %v822, %v822
        %v855 = vpack.c.b16 %v823, %v823
        %v856 = vpack.c.b16 %v824, %v824
        %v857 = vpack.c.b16 %v825, %v825
        %v858 = vpack.c.b16 %v826, %v826
        %v859 = vpack.c.b16 %v827, %v827
        %v860 = vpack.c.b16 %v828, %v828
        %v861 = vpack.c.b16 %v829, %v829
        %v862 = vpack.c.b16 %v830, %v830
        %v863 = vpack.c.b16 %v831, %v831
        %896 = vst [vmem:[%s244] sm:$0xf] %v832
        %897 = vst [vmem:[%s244 + $0x4] sm:$0xf] %v833
        %898 = vst [vmem:[%s244 + $0x8] sm:$0xf] %v834
        %899 = vst [vmem:[%s244 + $0xc] sm:$0xf] %v835
        %900 = vst [vmem:[%s244 + $0x10] sm:$0xf] %v836
        %901 = vst [vmem:[%s244 + $0x14] sm:$0xf] %v837
        %902 = vst [vmem:[%s244 + $0x18] sm:$0xf] %v838
        %903 = vst [vmem:[%s244 + $0x1c] sm:$0xf] %v839
        %904 = vst [vmem:[%s244 + $0x20] sm:$0xf] %v840
        %905 = vst [vmem:[%s244 + $0x24] sm:$0xf] %v841
        %906 = vst [vmem:[%s244 + $0x28] sm:$0xf] %v842
        %907 = vst [vmem:[%s244 + $0x2c] sm:$0xf] %v843
        %908 = vst [vmem:[%s244 + $0x30] sm:$0xf] %v844
        %909 = vst [vmem:[%s244 + $0x34] sm:$0xf] %v845
        %910 = vst [vmem:[%s244 + $0x38] sm:$0xf] %v846
        %911 = vst [vmem:[%s244 + $0x3c] sm:$0xf] %v847
        %912 = vst [vmem:[%s244 + $0x40] sm:$0xf] %v848
        %913 = vst [vmem:[%s244 + $0x44] sm:$0xf] %v849
        %914 = vst [vmem:[%s244 + $0x48] sm:$0xf] %v850
        %915 = vst [vmem:[%s244 + $0x4c] sm:$0xf] %v851
        %916 = vst [vmem:[%s244 + $0x50] sm:$0xf] %v852
        %917 = vst [vmem:[%s244 + $0x54] sm:$0xf] %v853
        %918 = vst [vmem:[%s244 + $0x58] sm:$0xf] %v854
        %919 = vst [vmem:[%s244 + $0x5c] sm:$0xf] %v855
        %920 = vst [vmem:[%s244 + $0x60] sm:$0xf] %v856
        %921 = vst [vmem:[%s244 + $0x64] sm:$0xf] %v857
        %922 = vst [vmem:[%s244 + $0x68] sm:$0xf] %v858
        %923 = vst [vmem:[%s244 + $0x6c] sm:$0xf] %v859
        %924 = vst [vmem:[%s244 + $0x70] sm:$0xf] %v860
        %925 = vst [vmem:[%s244 + $0x74] sm:$0xf] %v861
        %926 = vst [vmem:[%s244 + $0x78] sm:$0xf] %v862
        %927 = vst [vmem:[%s244 + $0x7c] sm:$0xf] %v863
        %s928 = sand.u32 %s121, 1
        %s929 = scalar_lea.sflag [#allocation4], %s928
        %s930 = sand.u32 %s121, 1
        %s931 = smul.addr %s930, 128
        %s932 = scalar_lea.vmem [#allocation8], %s931
        // Predicated region
        $region45: #{tpu_custom_call.1} parent=31 // pred_check
          %p933 = pneg %p131
        $region46: #{tpu_custom_call.1} parent=31 // pred_check_branch
          %935 = sbr.rel (%p933) target = $region48
        $region47: #{tpu_custom_call.1} parent=31 // pred_region
          %s936 = smul.u32 32, %s25
          %s938 = ssub.s32 2048, 2048
          %939 = vsyncadd %s929, %s938
          %s940 = sadd.s32 %s26, %s936
          %s941 = smul.addr %s940, 64
          %s942 = scalar_lea.hbm %s3, %s941
          %s943 = sshll.u32 %s932, 4
          %s944 = int_to_ptr.vmem [resolvable:$true] %s943
          %949 = dma.vmem_to_hbm [thread:$0]  %s944, 2048, %s942, %s929, 64, 64, 4
        $region48: #{tpu_custom_call.1} parent=31 // pred_fallthru
          _
      $region32: #{tpu_custom_call.1} parent=5 // pred_fallthru
        _
      %p950 = scmp.le.s32.totalorder 2, %s16
      // Predicated region
      $region49: #{tpu_custom_call.1} parent=5 // pred_check
        %p951 = pneg %p950
      $region50: #{tpu_custom_call.1} parent=5 // pred_check_branch
        %953 = sbr.rel (%p951) target = $region52
      $region51: #{tpu_custom_call.1} parent=5 // pred_region
        %s954 = ssub.s32 %s16, 2
        // Predicated region
        $region53: #{tpu_custom_call.1} parent=51 // pred_check
          %p955 = pneg %p137
        $region54: #{tpu_custom_call.1} parent=51 // pred_check_branch
          %957 = sbr.rel (%p955) target = $region56
        $region55: #{tpu_custom_call.1} parent=51 // pred_region
          %s958 = sand.u32 %s122, 1
          %s959 = scalar_lea.sflag [#allocation4], %s958
          %s960 = sand.u32 %s122, 1
          %s961 = smul.addr %s960, 128
          %s962 = scalar_lea.vmem [#allocation8], %s961
          %963 = dma.done %s959, 2048
        $region56: #{tpu_custom_call.1} parent=51 // pred_fallthru
          _
      $region52: #{tpu_custom_call.1} parent=5 // pred_fallthru
        _
    $region6: #{tpu_custom_call.1} parent=1 // loop_footer
      %s20 = sadd.s32 1, %s16
    $region7: #{tpu_custom_call.1} parent=1 // loop_footer_branch
      %15 = sbr.rel target = $region3
    $region8: #{tpu_custom_call.1} parent=1 // loop_exit
      _
    %964 = vsyncpa [#allocation3], 1
    %s965 = scalar_lea.sflag [#allocation3], 1
    %966 = vsyncpa %s965, 1
    %967 = vsyncpa [#allocation6], 1
    %968 = vsyncpa [#allocation4], 1
    %s969 = scalar_lea.sflag [#allocation4], 1
    %970 = vsyncpa %s969, 1

</llo_original>
